<compile_context>
chip_gen: v5e
topology: v5e:2x2
jax: 0.10.0
libtpu: 0.0.40
codegen_flags: <defaults>
</compile_context>

<pallas_src>
import functools

import jax
import jax.numpy as jnp
from jax import lax
from jax.experimental import pallas as pl
from jax.experimental.pallas import tpu as pltpu

IGNORE_INDEX = 255


# ---------------------------------------------------------------------------
# Pallas kernel: class-major per-pixel cross entropy + deferred reduction
# ---------------------------------------------------------------------------
def _ce_kernel(hw, steps, has_weight, logits_ref, lbl_ref, w_ref,
               loss_ref, wsum_ref, acc_loss, acc_w):
    tp = logits_ref.shape[-1]            # pixels per block (lane axis)
    j = pl.program_id(2)                 # pixel step within the current chunk

    # Reset the per-lane accumulators at the start of each (batch, chunk)
    # pixel loop (the step axis is the innermost grid axis).
    @pl.when(j == 0)
    def _():
        acc_loss[...] = jnp.zeros_like(acc_loss)
        acc_w[...] = jnp.zeros_like(acc_w)

    logits = logits_ref[0].astype(jnp.float32)      # (C, TP)  classes on sublanes
    lbl = lbl_ref[0].astype(jnp.int32)              # (1, TP)
    c = logits.shape[0]

    # Global pixel index of each lane, from the *intended* (pre-clamp) tile
    # index.  Fully-out-of-range tail tiles and the ragged tail of the last
    # valid tile are masked here.
    blk = pl.program_id(1) * steps + j
    pix = blk * tp + lax.broadcasted_iota(jnp.int32, (1, tp), 1)
    inb = pix < hw                                   # (1, TP)

    cls = lax.broadcasted_iota(jnp.int32, (c, tp), 0)
    # ignore_index=255 never matches a class row (C < 255), so the one-hot is
    # all-false for ignored pixels -> picked logit / picked weight are 0.
    onehot = (cls == lbl) & inb                      # (C, TP)
    valid = inb & (lbl >= 0) & (lbl < c)             # (1, TP) non-ignored pixels

    # Numerically stable log-sum-exp over classes (sublane axis).
    m = jnp.max(logits, axis=0, keepdims=True)                           # (1, TP)
    lse = m + jnp.log(jnp.sum(jnp.exp(logits - m), axis=0, keepdims=True))

    picked = jnp.sum(jnp.where(onehot, logits, 0.0), axis=0, keepdims=True)

    if has_weight:
        wvec = w_ref[...].astype(jnp.float32)        # (C, 1)
        w_lbl = jnp.sum(jnp.where(onehot, wvec, 0.0), axis=0, keepdims=True)
    else:
        # Fast path: no per-class select, no extra sublane reduce.
        w_lbl = valid.astype(jnp.float32)

    # Out-of-bounds lanes may hold garbage logits (possible inf/nan lse);
    # `valid` is False there (and for ignored pixels), forcing the product to 0.
    per_px = jnp.where(valid, w_lbl * (lse - picked), 0.0)

    # Pure per-lane VPU accumulation; no per-step cross-lane reduce.
    acc_loss[...] = acc_loss[...] + per_px
    acc_w[...] = acc_w[...] + w_lbl

    # Final cross-lane reduction + scalar write, once per (batch, chunk).
    @pl.when(j == pl.num_programs(2) - 1)
    def _():
        loss_ref[...] = jnp.sum(acc_loss[...], axis=1,
                                keepdims=True).reshape(loss_ref.shape)
        wsum_ref[...] = jnp.sum(acc_w[...], axis=1,
                                keepdims=True).reshape(wsum_ref.shape)


def _ce_call(logits3, labels3, wvec, tile_p, hw, has_weight, vmem_limit):
    """logits3: (N, C, HW) native dtype, labels3: (N, 1, HW) int, wvec: (C, 1) f32."""
    n, c, _ = logits3.shape
    total_tiles = pl.cdiv(hw, tile_p)
    # Split the pixel range into 2 "parallel" chunks so a second TensorCore
    # (v7x megacore) has work even when N == 1.
    n_chunks = 2 if total_tiles >= 2 else 1
    steps = pl.cdiv(total_tiles, n_chunks)

    def pix_block(i, ch, j):
        b = ch * steps + j
        if n_chunks * steps != total_tiles:
            # Tail tiles past the end re-read the last valid block; their
            # contribution is zeroed by the in-kernel (pix < hw) mask.
            b = jnp.minimum(b, total_tiles - 1)
        return b

    kernel = functools.partial(_ce_kernel, hw, steps, has_weight)

    loss_parts, w_parts = pl.pallas_call(
        kernel,
        out_shape=(
            jax.ShapeDtypeStruct((n, n_chunks, 1, 1), jnp.float32),
            jax.ShapeDtypeStruct((n, n_chunks, 1, 1), jnp.float32),
        ),
        grid_spec=pltpu.PrefetchScalarGridSpec(
            num_scalar_prefetch=0,
            grid=(n, n_chunks, steps),
            in_specs=[
                pl.BlockSpec((1, c, tile_p),
                             lambda i, ch, j: (i, 0, pix_block(i, ch, j))),
                pl.BlockSpec((1, 1, tile_p),
                             lambda i, ch, j: (i, 0, pix_block(i, ch, j))),
                pl.BlockSpec((c, 1), lambda i, ch, j: (0, 0)),
            ],
            out_specs=[
                pl.BlockSpec((1, 1, 1, 1), lambda i, ch, j: (i, ch, 0, 0)),
                pl.BlockSpec((1, 1, 1, 1), lambda i, ch, j: (i, ch, 0, 0)),
            ],
            scratch_shapes=[
                pltpu.VMEM((1, tile_p), jnp.float32),
                pltpu.VMEM((1, tile_p), jnp.float32),
            ],
        ),
        compiler_params=pltpu.CompilerParams(
            dimension_semantics=("parallel", "parallel", "arbitrary"),
            vmem_limit_bytes=vmem_limit),
    )(logits3, labels3, wvec)
    return jnp.sum(loss_parts), jnp.sum(w_parts)


# ---------------------------------------------------------------------------
# C/dtype-aware tile selection with per-generation VMEM budget
# ---------------------------------------------------------------------------
def _pick_tile(c, logit_bytes, label_bytes, hw, tile_override):
    try:
        phys = int(pltpu.get_tpu_info().vmem_capacity_bytes)
    except Exception:
        phys = 64 << 20            # conservative (v7x physical VMEM)
    budget = phys // 2             # pipeline working-set target (32/64/64 MiB)

    # Double-buffered logits + labels, single-buffered f32 scratch (2 arrays).
    per_px = 2 * (c * logit_bytes + label_bytes) + 8

    if tile_override is not None:
        tile_p = max(128, (int(tile_override) // 128) * 128)
    else:
        # Multi-MB logits blocks so per-step DMA >> ~0.35 us grid-step overhead.
        t_target = (4 << 20) // max(1, c * logit_bytes)
        t_target = max(4096, min(t_target, 65536))
        t_vmem = max(128, (budget - (2 << 20)) // per_px)
        tile_p = min(t_target, t_vmem)
        tile_p = min(tile_p, pl.cdiv(hw, 128) * 128)   # don't over-allocate tiny inputs
        tile_p = max(128, (tile_p // 128) * 128)

    ws = tile_p * per_px + c * 4 + (2 << 20)           # working set + slack
    vmem_limit = int(min(phys - (8 << 20), max(ws + (4 << 20), 32 << 20)))
    return int(tile_p), vmem_limit


# ---------------------------------------------------------------------------
# Glue: bilinear resize with align_corners=True (PyTorch F.interpolate match)
# ---------------------------------------------------------------------------
def _bilinear_align_corners(x, out_h, out_w):
    n, c, in_h, in_w = x.shape
    if in_h == out_h and in_w == out_w:
        return x
    out_dtype = x.dtype

    def coords(out_sz, in_sz):
        if out_sz == 1:
            src = jnp.zeros((out_sz,), jnp.float32)
        else:
            src = jnp.arange(out_sz, dtype=jnp.float32) * (in_sz - 1) / (out_sz - 1)
        lo = jnp.floor(src).astype(jnp.int32)
        hi = jnp.minimum(lo + 1, in_sz - 1)
        frac = src - lo.astype(jnp.float32)
        return lo, hi, frac

    y0, y1, fy = coords(out_h, in_h)
    x0, x1, fx = coords(out_w, in_w)

    xf = x.astype(jnp.float32)
    top = jnp.take(xf, y0, axis=2)                   # (N, C, out_h, W)
    bot = jnp.take(xf, y1, axis=2)
    row = top + (bot - top) * fy[None, None, :, None]
    left = jnp.take(row, x0, axis=3)                 # (N, C, out_h, out_w)
    right = jnp.take(row, x1, axis=3)
    out = left + (right - left) * fx[None, None, None, :]
    # Cast back to the prediction dtype (matches F.interpolate; halves the CE
    # kernel's HBM read for bf16 predictions).
    return out.astype(out_dtype)


# ---------------------------------------------------------------------------
# Module wrapper (mirrors utils/criterion.py::CrossEntropy.forward)
# ---------------------------------------------------------------------------
@functools.partial(jax.jit, static_argnames=("tile",))
def cross_entropy_forward(pred, lbl, weight=None, tile=None):
    # pred: (N, C, Hp, Wp) float, lbl: (N, H, W) int
    n, c, hp, wp = pred.shape
    assert c < IGNORE_INDEX, "ignore_index trick requires C < 255"
    # NB: reproduces the original code exactly: both h and w come from lbl.size(1)
    h = lbl.shape[1]
    w = lbl.shape[1]
    if hp != h or wp != w:
        pred = _bilinear_align_corners(pred, h, w)

    # Class-major consumption: free reshape of contiguous NCHW, no transpose,
    # no wrapper-side astype/pad of the big logits tensor.
    logits3 = pred.reshape(n, c, -1)                      # (N, C, HW)

    # Keep the caller's (possibly narrow) integer label dtype: int16/uint8
    # labels are read at 1-2 B/px in-kernel and widened to int32 on-chip.
    # Forcing an int32->int16 downcast here would add a full HBM round trip.
    if jnp.issubdtype(lbl.dtype, jnp.integer) and jnp.dtype(lbl.dtype).itemsize <= 4:
        labels3 = lbl.reshape(n, 1, -1)                   # (N, 1, HW)
    else:
        labels3 = lbl.reshape(n, 1, -1).astype(jnp.int32)
    hw = logits3.shape[2]
    assert labels3.shape[2] == hw, "label pixel count must match prediction"

    has_weight = weight is not None
    if has_weight:
        wvec = jnp.asarray(weight, jnp.float32).reshape(c, 1)
    else:
        wvec = jnp.ones((c, 1), jnp.float32)              # unused in the kernel

    logit_bytes = jnp.dtype(logits3.dtype).itemsize
    label_bytes = jnp.dtype(labels3.dtype).itemsize
    tile_p, vmem_limit = _pick_tile(c, logit_bytes, label_bytes, hw, tile)

    sum_loss, wsum = _ce_call(logits3, labels3, wvec, tile_p, hw,
                              has_weight, vmem_limit)
    # reduction='mean': weighted sum / sum of weights over non-ignored pixels
    return sum_loss / wsum


# ---------------------------------------------------------------------------
# Pure-JAX reference (for a sanity check in __main__)
# ---------------------------------------------------------------------------
def _reference(pred, lbl, weight=None):
    n, c, hp, wp = pred.shape
    h = w = lbl.shape[1]
    if hp != h or wp != w:
        pred = _bilinear_align_corners(pred, h, w)
    logits = jnp.transpose(pred, (0, 2, 3, 1)).reshape(-1, c).astype(jnp.float32)
    labels = lbl.reshape(-1).astype(jnp.int32)
    wvec = jnp.ones((c,), jnp.float32) if weight is None else jnp.asarray(weight, jnp.float32)
    valid = labels != IGNORE_INDEX
    safe_lbl = jnp.where(valid, labels, 0)
    logp = jax.nn.log_softmax(logits, axis=-1)
    nll = -jnp.take_along_axis(logp, safe_lbl[:, None], axis=-1)[:, 0]
    wl = wvec[safe_lbl]
    num = jnp.sum(jnp.where(valid, wl * nll, 0.0))
    den = jnp.sum(jnp.where(valid, wl, 0.0))
    return num / den


if __name__ == "__main__":
    key = jax.random.PRNGKey(0)
    k1, k2, k3 = jax.random.split(key, 3)

    N, C, H, W = 2, 4, 16, 16
    pred = jax.random.normal(k1, (N, C, H, W), dtype=jnp.float32)
    lbl = jax.random.randint(k2, (N, H, W), 0, C, dtype=jnp.int32)
    # Sprinkle some ignore_index=255 pixels.
    ignore_mask = jax.random.uniform(k3, (N, H, W)) < 0.1
    lbl = jnp.where(ignore_mask, IGNORE_INDEX, lbl)

    loss = jax.block_until_ready(cross_entropy_forward(pred, lbl))
    ref = _reference(pred, lbl)
    assert jnp.allclose(loss, ref, rtol=1e-5, atol=1e-5), (loss, ref)

    # Exercise the bilinear-upsample branch (pred smaller than label).
    pred_small = jax.random.normal(k1, (N, C, H // 2, W // 2), dtype=jnp.float32)
    loss2 = jax.block_until_ready(cross_entropy_forward(pred_small, lbl))
    ref2 = _reference(pred_small, lbl)
    assert jnp.allclose(loss2, ref2, rtol=1e-5, atol=1e-5), (loss2, ref2)

    # Exercise class weights.
    wts = jnp.array([0.5, 2.0, 1.0, 0.25], dtype=jnp.float32)
    loss3 = jax.block_until_ready(cross_entropy_forward(pred, lbl, wts))
    ref3 = _reference(pred, lbl, wts)
    assert jnp.allclose(loss3, ref3, rtol=1e-5, atol=1e-5), (loss3, ref3)

    # Exercise the multi-tile / 2-chunk megacore path with a ragged tail,
    # N=1, int16 labels, and the clamped fully-out-of-range tail tile
    # (hw=576, tile=128 -> 5 tiles, 2 chunks of 3 steps).
    N2, C2, H2 = 1, 6, 24
    p4 = jax.random.normal(k1, (N2, C2, H2, H2), dtype=jnp.float32)
    l4 = jax.random.randint(k2, (N2, H2, H2), 0, C2, dtype=jnp.int32)
    l4 = jnp.where(jax.random.uniform(k3, (N2, H2, H2)) < 0.15, IGNORE_INDEX, l4)
    l4 = l4.astype(jnp.int16)
    loss4 = jax.block_until_ready(cross_entropy_forward(p4, l4, tile=128))
    ref4 = _reference(p4, l4)
    assert jnp.allclose(loss4, ref4, rtol=1e-5, atol=1e-5), (loss4, ref4)

    print("KERNEL_OK")
</pallas_src>

<mosaic_0001>
module attributes {stable_mosaic.version = 11 : i64} {
  func.func @_ce_kernel(%arg0: i32, %arg1: i32, %arg2: i32, %arg3: memref<1x4x256xf32, #tpu.memory_space<vmem>>, %arg4: memref<1x1x256xi32, #tpu.memory_space<vmem>>, %arg5: memref<4x1xf32, #tpu.memory_space<vmem>>, %arg6: memref<1x1x1x1xf32, #tpu.memory_space<vmem>>, %arg7: memref<1x1x1x1xf32, #tpu.memory_space<vmem>>, %arg8: memref<1x256xf32, #tpu.memory_space<vmem>>, %arg9: memref<1x256xf32, #tpu.memory_space<vmem>>) attributes {dimension_semantics = [#tpu.dimension_semantics<parallel>, #tpu.dimension_semantics<parallel>, #tpu.dimension_semantics<arbitrary>], iteration_bounds = array<i64: 2, 1, 1>, scalar_prefetch = 0 : i64, scratch_operands = 2 : i64, tpu.core_type = #tpu.core_type<tc>, window_params = [{transform_indices = @transform_0, window_bounds = array<i64: 1, 4, 256>}, {transform_indices = @transform_1, window_bounds = array<i64: 1, 1, 256>}, {pipeline_mode = #tpu.pipeline_mode<synchronous>, transform_indices = @transform_2, window_bounds = array<i64: 4, 1>}, {transform_indices = @transform_3, window_bounds = array<i64: 1, 1, 1, 1>}, {transform_indices = @transform_4, window_bounds = array<i64: 1, 1, 1, 1>}]} {
    %c0_i32 = arith.constant 0 : i32
    %0 = arith.cmpi eq, %arg2, %c0_i32 : i32
    %1 = arith.extui %0 : i1 to i32
    %c0_i32_0 = arith.constant 0 : i32
    %2 = arith.cmpi ne, %1, %c0_i32_0 : i32
    scf.if %2 {
      %cst_22 = arith.constant 0.000000e+00 : f32
      %54 = vector.broadcast %cst_22 : f32 to vector<1x256xf32>
      %c0_23 = arith.constant 0 : index
      %c0_24 = arith.constant 0 : index
      %55 = vector.load %arg8[%c0_23, %c0_24] : memref<1x256xf32, #tpu.memory_space<vmem>>, vector<1x256xf32>
      tpu.vector_store %arg8[%c0_23, %c0_24], %54 {strides = array<i32>} : memref<1x256xf32, #tpu.memory_space<vmem>>, vector<1x256xf32>,
      %cst_25 = arith.constant 0.000000e+00 : f32
      %56 = vector.broadcast %cst_25 : f32 to vector<1x256xf32>
      %c0_26 = arith.constant 0 : index
      %c0_27 = arith.constant 0 : index
      %57 = vector.load %arg9[%c0_26, %c0_27] : memref<1x256xf32, #tpu.memory_space<vmem>>, vector<1x256xf32>
      tpu.vector_store %arg9[%c0_26, %c0_27], %56 {strides = array<i32>} : memref<1x256xf32, #tpu.memory_space<vmem>>, vector<1x256xf32>,
    } else {
    }
    %c0 = arith.constant 0 : index
    %c0_1 = arith.constant 0 : index
    %c0_2 = arith.constant 0 : index
    %3 = vector.load %arg3[%c0, %c0_1, %c0_2] : memref<1x4x256xf32, #tpu.memory_space<vmem>>, vector<1x4x256xf32>
    %4 = vector.shape_cast %3 : vector<1x4x256xf32> to vector<4x256xf32>
    %c0_3 = arith.constant 0 : index
    %c0_4 = arith.constant 0 : index
    %c0_5 = arith.constant 0 : index
    %5 = vector.load %arg4[%c0_3, %c0_4, %c0_5] : memref<1x1x256xi32, #tpu.memory_space<vmem>>, vector<1x1x256xi32>
    %6 = vector.shape_cast %5 : vector<1x1x256xi32> to vector<1x256xi32>
    %c1_i32 = arith.constant 1 : i32
    %7 = arith.muli %arg1, %c1_i32 : i32
    %8 = arith.addi %7, %arg2 : i32
    %c256_i32 = arith.constant 256 : i32
    %9 = arith.muli %8, %c256_i32 : i32
    %10 = tpu.iota {dimensions = array<i32: 1>} : vector<1x256xi32>
    %11 = vector.broadcast %9 : i32 to vector<1x256xi32>
    %12 = arith.addi %11, %10 : vector<1x256xi32>
    %c256_i32_6 = arith.constant 256 : i32
    %13 = vector.broadcast %c256_i32_6 : i32 to vector<1x256xi32>
    %14 = arith.cmpi slt, %12, %13 : vector<1x256xi32>
    %15 = tpu.iota {dimensions = array<i32: 0>} : vector<4x256xi32>
    %16 = vector.broadcast %6 : vector<1x256xi32> to vector<4x256xi32>
    %17 = arith.cmpi eq, %15, %16 : vector<4x256xi32>
    %18 = vector.broadcast %14 : vector<1x256xi1> to vector<4x256xi1>
    %19 = arith.andi %17, %18 : vector<4x256xi1>
    %c0_i32_7 = arith.constant 0 : i32
    %20 = vector.broadcast %c0_i32_7 : i32 to vector<1x256xi32>
    %21 = arith.cmpi sge, %6, %20 : vector<1x256xi32>
    %22 = arith.andi %14, %21 : vector<1x256xi1>
    %c4_i32 = arith.constant 4 : i32
    %23 = vector.broadcast %c4_i32 : i32 to vector<1x256xi32>
    %24 = arith.cmpi slt, %6, %23 : vector<1x256xi32>
    %25 = arith.andi %22, %24 : vector<1x256xi1>
    %cst = arith.constant dense<0xFF800000> : vector<256xf32>
    %26 = vector.multi_reduction <maximumf>, %4, %cst [0] : vector<4x256xf32> to vector<256xf32>
    %27 = vector.shape_cast %26 : vector<256xf32> to vector<1x256xf32>
    %28 = vector.broadcast %27 : vector<1x256xf32> to vector<4x256xf32>
    %29 = arith.subf %4, %28 : vector<4x256xf32>
    %30 = math.exp %29 : vector<4x256xf32>
    %cst_8 = arith.constant dense<0.000000e+00> : vector<256xf32>
    %31 = vector.multi_reduction <add>, %30, %cst_8 [0] : vector<4x256xf32> to vector<256xf32>
    %32 = vector.shape_cast %31 : vector<256xf32> to vector<1x256xf32>
    %33 = math.log %32 : vector<1x256xf32>
    %34 = arith.addf %27, %33 : vector<1x256xf32>
    %cst_9 = arith.constant 0.000000e+00 : f32
    %35 = vector.broadcast %cst_9 : f32 to vector<4x256xf32>
    %36 = arith.select %19, %4, %35 : vector<4x256xi1>, vector<4x256xf32>
    %cst_10 = arith.constant dense<0.000000e+00> : vector<256xf32>
    %37 = vector.multi_reduction <add>, %36, %cst_10 [0] : vector<4x256xf32> to vector<256xf32>
    %38 = vector.shape_cast %37 : vector<256xf32> to vector<1x256xf32>
    %39 = arith.extui %25 : vector<1x256xi1> to vector<1x256xi32>
    %40 = arith.sitofp %39 : vector<1x256xi32> to vector<1x256xf32>
    %41 = arith.subf %34, %38 : vector<1x256xf32>
    %42 = arith.mulf %40, %41 : vector<1x256xf32>
    %cst_11 = arith.constant 0.000000e+00 : f32
    %43 = vector.broadcast %cst_11 : f32 to vector<1x256xf32>
    %44 = arith.select %25, %42, %43 : vector<1x256xi1>, vector<1x256xf32>
    %c0_12 = arith.constant 0 : index
    %c0_13 = arith.constant 0 : index
    %45 = vector.load %arg8[%c0_12, %c0_13] : memref<1x256xf32, #tpu.memory_space<vmem>>, vector<1x256xf32>
    %46 = arith.addf %45, %44 : vector<1x256xf32>
    %c0_14 = arith.constant 0 : index
    %c0_15 = arith.constant 0 : index
    %47 = vector.load %arg8[%c0_14, %c0_15] : memref<1x256xf32, #tpu.memory_space<vmem>>, vector<1x256xf32>
    tpu.vector_store %arg8[%c0_14, %c0_15], %46 {strides = array<i32>} : memref<1x256xf32, #tpu.memory_space<vmem>>, vector<1x256xf32>,
    %c0_16 = arith.constant 0 : index
    %c0_17 = arith.constant 0 : index
    %48 = vector.load %arg9[%c0_16, %c0_17] : memref<1x256xf32, #tpu.memory_space<vmem>>, vector<1x256xf32>
    %49 = arith.addf %48, %40 : vector<1x256xf32>
    %c0_18 = arith.constant 0 : index
    %c0_19 = arith.constant 0 : index
    %50 = vector.load %arg9[%c0_18, %c0_19] : memref<1x256xf32, #tpu.memory_space<vmem>>, vector<1x256xf32>
    tpu.vector_store %arg9[%c0_18, %c0_19], %49 {strides = array<i32>} : memref<1x256xf32, #tpu.memory_space<vmem>>, vector<1x256xf32>,
    %c0_i32_20 = arith.constant 0 : i32
    %51 = arith.cmpi eq, %arg2, %c0_i32_20 : i32
    %52 = arith.extui %51 : i1 to i32
    %c0_i32_21 = arith.constant 0 : i32
    %53 = arith.cmpi ne, %52, %c0_i32_21 : i32
    scf.if %53 {
      %c0_22 = arith.constant 0 : index
      %c0_23 = arith.constant 0 : index
      %54 = vector.load %arg8[%c0_22, %c0_23] : memref<1x256xf32, #tpu.memory_space<vmem>>, vector<1x256xf32>
      %cst_24 = arith.constant dense<0.000000e+00> : vector<1xf32>
      %55 = vector.multi_reduction <add>, %54, %cst_24 [1] : vector<1x256xf32> to vector<1xf32>
      %56 = vector.shape_cast %55 : vector<1xf32> to vector<1x1xf32>
      %57 = vector.shape_cast %56 : vector<1x1xf32> to vector<1x1x1x1xf32>
      %c0_25 = arith.constant 0 : index
      %c0_26 = arith.constant 0 : index
      %c0_27 = arith.constant 0 : index
      %c0_28 = arith.constant 0 : index
      %58 = vector.load %arg6[%c0_25, %c0_26, %c0_27, %c0_28] : memref<1x1x1x1xf32, #tpu.memory_space<vmem>>, vector<1x1x1x1xf32>
      tpu.vector_store %arg6[%c0_25, %c0_26, %c0_27, %c0_28], %57 {strides = array<i32>} : memref<1x1x1x1xf32, #tpu.memory_space<vmem>>, vector<1x1x1x1xf32>,
      %c0_29 = arith.constant 0 : index
      %c0_30 = arith.constant 0 : index
      %59 = vector.load %arg9[%c0_29, %c0_30] : memref<1x256xf32, #tpu.memory_space<vmem>>, vector<1x256xf32>
      %cst_31 = arith.constant dense<0.000000e+00> : vector<1xf32>
      %60 = vector.multi_reduction <add>, %59, %cst_31 [1] : vector<1x256xf32> to vector<1xf32>
      %61 = vector.shape_cast %60 : vector<1xf32> to vector<1x1xf32>
      %62 = vector.shape_cast %61 : vector<1x1xf32> to vector<1x1x1x1xf32>
      %c0_32 = arith.constant 0 : index
      %c0_33 = arith.constant 0 : index
      %c0_34 = arith.constant 0 : index
      %c0_35 = arith.constant 0 : index
      %63 = vector.load %arg7[%c0_32, %c0_33, %c0_34, %c0_35] : memref<1x1x1x1xf32, #tpu.memory_space<vmem>>, vector<1x1x1x1xf32>
      tpu.vector_store %arg7[%c0_32, %c0_33, %c0_34, %c0_35], %62 {strides = array<i32>} : memref<1x1x1x1xf32, #tpu.memory_space<vmem>>, vector<1x1x1x1xf32>,
    } else {
    }
    return
  }
  func.func @transform_0(%arg0: i32, %arg1: i32, %arg2: i32) -> (i32, i32, i32) {
    %c1_i32 = arith.constant 1 : i32
    %0 = arith.muli %arg1, %c1_i32 : i32
    %1 = arith.addi %0, %arg2 : i32
    %c0_i32 = arith.constant 0 : i32
    %c0_i32_0 = arith.constant 0 : i32
    return %arg0, %c0_i32, %1 : i32, i32, i32
  }
  func.func @transform_1(%arg0: i32, %arg1: i32, %arg2: i32) -> (i32, i32, i32) {
    %c1_i32 = arith.constant 1 : i32
    %0 = arith.muli %arg1, %c1_i32 : i32
    %1 = arith.addi %0, %arg2 : i32
    %c0_i32 = arith.constant 0 : i32
    %c0_i32_0 = arith.constant 0 : i32
    return %arg0, %c0_i32, %1 : i32, i32, i32
  }
  func.func @transform_2(%arg0: i32, %arg1: i32, %arg2: i32) -> (i32, i32) {
    %c0_i32 = arith.constant 0 : i32
    %c0_i32_0 = arith.constant 0 : i32
    %c0_i32_1 = arith.constant 0 : i32
    return %c0_i32, %c0_i32_0 : i32, i32
  }
  func.func @transform_3(%arg0: i32, %arg1: i32, %arg2: i32) -> (i32, i32, i32, i32) {
    %c0_i32 = arith.constant 0 : i32
    %c0_i32_0 = arith.constant 0 : i32
    %c0_i32_1 = arith.constant 0 : i32
    return %arg0, %arg1, %c0_i32, %c0_i32_0 : i32, i32, i32, i32
  }
  func.func @transform_4(%arg0: i32, %arg1: i32, %arg2: i32) -> (i32, i32, i32, i32) {
    %c0_i32 = arith.constant 0 : i32
    %c0_i32_0 = arith.constant 0 : i32
    %c0_i32_1 = arith.constant 0 : i32
    return %arg0, %arg1, %c0_i32, %c0_i32_0 : i32, i32, i32, i32
  }
}

</mosaic_0001>

<llo_original>
// kernel: cross_entropy_forward.1
$region0: #{cross_entropy_forward.1}
  #allocation0 [shape = 'u32[]', space=smem, size = 0x4, offset = 0x4, fixed_abs, tag = 'smem constant byte address 0x4 - core index']
  #allocation1 [shape = 'u32[72,128]{1,0:T(1,128)}', space=vmem, size = 0x9000, scoped, tag = 'internal scratch']
  #allocation2 [shape = 'f32[1,256]{1,0:T(1,128)}', space=vmem, size = 0x400, scoped, tag = 'scratch operand']
  #allocation3 [shape = 'f32[1,256]{1,0:T(1,128)}', space=vmem, size = 0x400, scoped, tag = 'scratch operand']
  %s0 = inlined_call_operand.vmem [shape: f32[2,4,256], index: 0, kind: input, shape index: {}]
  %s1 = inlined_call_operand.vmem [shape: s32[2,1,256], index: 1, kind: input, shape index: {}]
  %s2 = inlined_call_operand.vmem [shape: f32[4,1], index: 2, kind: input, shape index: {}]
  %s3 = inlined_call_operand.vmem [shape: f32[2,1,1,1], index: 3, kind: output, shape index: {0}]
  %s4 = inlined_call_operand.vmem [shape: f32[2,1,1,1], index: 4, kind: output, shape index: {1}]
  %5 = xla_tuple %s3, %s4
  %s6 = sld [smem:[#allocation0]]
  $region61: #{cross_entropy_forward.1} parent=0
    _
  %s8 = ssub.s32 1, %s6
  %s9 = scalar_select 0, %s8, %s6
  loop: start=0, step=1, limit=4
  $region2: #{cross_entropy_forward.1} parent=0 // loop_pre_header
    _
  $region3: #{cross_entropy_forward.1} parent=0 // loop_header
    %s11 = sphi 0, %s15
    %p12 = scmp.ge.s32.totalorder %s11, 4
    %s18 = sphi 0, %s37
    %s19 = sphi 0, %s33
    %s20 = sphi 0, %s29
    %s21 = sphi 0, %s18
    %s22 = sphi 0, %s19
    %s23 = sphi 0, %s20
    %s24 = sphi 0, %s21
    %s25 = sphi 0, %s22
    %s26 = sphi 0, %s23
    %s44 = sphi 0, %s46
    %s47 = sphi 0, %s44
    %s48 = sphi 0, %s47
    %s64 = sphi 0, %s48
    %s74 = sphi 0, %s76
    %s77 = sphi 0, %s74
    %s78 = sphi 0, %s77
    %s94 = sphi 0, %s78
    %s98 = sphi 0, %s98
    %s100 = sphi 0, %s98
    %s101 = sphi 0, %s100
    %s115 = sphi 0, %s101
    %s123 = sphi 0, %s125
    %s126 = sphi 0, %s123
    %s127 = sphi 0, %s126
    %s143 = sphi 0, %s127
    %s151 = sphi 0, %s153
    %s154 = sphi 0, %s151
    %s155 = sphi 0, %s154
    %s171 = sphi 0, %s155
  $region4: #{cross_entropy_forward.1} parent=0 // loop_header_branch
    %14 = sbr.rel (%p12) target = $region8
  $region5: #{cross_entropy_forward.1} parent=0 // loop_body
    %s16 = ssub.s32 %s11, 1
    %s17 = ssub.s32 %s11, 2
    %s27 = sadd.s32 1, %s20
    %p28 = scmp.ge.s32.totalorder %s27, 1
    %s29 = scalar_select %p28, 0, %s27
    %s30 = sadd.s32 1, %s19
    %s31 = scalar_select %p28, %s30, %s19
    %p32 = scmp.ge.s32.totalorder %s31, 1
    %s33 = scalar_select %p32, 0, %s31
    %s34 = sadd.s32 1, %s18
    %s35 = scalar_select %p32, %s34, %s18
    %p36 = scmp.ge.s32.totalorder %s35, 2
    %s37 = scalar_select %p36, 0, %s35
    %s38 = sadd.s32 %s19, %s20
    %s39 = sadd.s32 %s33, %s29
    %s40 = ssub.s32 %s18, %s37
    %s41 = ssub.s32 %s38, %s39
    %s42 = sor.u32 %s40, %s41
    %p43 = scmp.eq.s32.totalorder %s42, 0
    %s45 = sadd.s32 %s44, 1
    %s46 = scalar_select %p43, %s44, %s45
    %p49 = pneg %p43
    %p50 = scmp.eq.s32.totalorder %s11, 1
    %p51 = por %p49, %p50
    %p52 = scmp.ne.s32.totalorder %s44, %s47
    %p53 = scmp.eq.s32.totalorder %s11, 0
    %p54 = por %p52, %p53
    %p55 = scmp.ne.s32.totalorder %s44, %s47
    %p56 = scmp.eq.s32.totalorder %s16, 1
    %p57 = por %p55, %p56
    %p58 = scmp.ne.s32.totalorder %s47, %s48
    %p59 = scmp.eq.s32.totalorder %s16, 0
    %p60 = por %p58, %p59
    %p61 = scmp.ne.s32.totalorder %s47, %s48
    %p62 = scmp.eq.s32.totalorder %s17, 1
    %p63 = por %p61, %p62
    %p65 = scmp.ne.s32.totalorder %s48, %s64
    %p66 = scmp.eq.s32.totalorder %s17, 0
    %p67 = por %p65, %p66
    %s68 = sadd.s32 %s19, %s20
    %s69 = sadd.s32 %s33, %s29
    %s70 = ssub.s32 %s18, %s37
    %s71 = ssub.s32 %s68, %s69
    %s72 = sor.u32 %s70, %s71
    %p73 = scmp.eq.s32.totalorder %s72, 0
    %s75 = sadd.s32 %s74, 1
    %s76 = scalar_select %p73, %s74, %s75
    %p79 = pneg %p73
    %p80 = scmp.eq.s32.totalorder %s11, 1
    %p81 = por %p79, %p80
    %p82 = scmp.ne.s32.totalorder %s74, %s77
    %p83 = scmp.eq.s32.totalorder %s11, 0
    %p84 = por %p82, %p83
    %p85 = scmp.ne.s32.totalorder %s74, %s77
    %p86 = scmp.eq.s32.totalorder %s16, 1
    %p87 = por %p85, %p86
    %p88 = scmp.ne.s32.totalorder %s77, %s78
    %p89 = scmp.eq.s32.totalorder %s16, 0
    %p90 = por %p88, %p89
    %p91 = scmp.ne.s32.totalorder %s77, %s78
    %p92 = scmp.eq.s32.totalorder %s17, 1
    %p93 = por %p91, %p92
    %p95 = scmp.ne.s32.totalorder %s78, %s94
    %p96 = scmp.eq.s32.totalorder %s17, 0
    %p97 = por %p95, %p96
    %s99 = sadd.s32 %s98, 1
    %p102 = scmp.eq.s32.totalorder %s11, 1
    %p103 = scmp.ne.s32.totalorder %s98, %s100
    %p104 = scmp.eq.s32.totalorder %s11, 0
    %p105 = por %p103, %p104
    %p106 = scmp.ne.s32.totalorder %s98, %s100
    %p107 = scmp.eq.s32.totalorder %s16, 1
    %p108 = por %p106, %p107
    %p109 = scmp.ne.s32.totalorder %s100, %s101
    %p110 = scmp.eq.s32.totalorder %s16, 0
    %p111 = por %p109, %p110
    %p112 = scmp.ne.s32.totalorder %s100, %s101
    %p113 = scmp.eq.s32.totalorder %s17, 1
    %p114 = por %p112, %p113
    %p116 = scmp.ne.s32.totalorder %s101, %s115
    %p117 = scmp.eq.s32.totalorder %s17, 0
    %p118 = por %p116, %p117
    %s119 = ssub.s32 %s18, %s37
    %s120 = ssub.s32 %s19, %s33
    %s121 = sor.u32 %s119, %s120
    %p122 = scmp.eq.s32.totalorder %s121, 0
    %s124 = sadd.s32 %s123, 1
    %s125 = scalar_select %p122, %s123, %s124
    %p128 = pneg %p122
    %p129 = scmp.eq.s32.totalorder %s11, 1
    %p130 = por %p128, %p129
    %p131 = scmp.ne.s32.totalorder %s123, %s126
    %p132 = scmp.eq.s32.totalorder %s11, 0
    %p133 = por %p131, %p132
    %p134 = scmp.ne.s32.totalorder %s123, %s126
    %p135 = scmp.eq.s32.totalorder %s16, 1
    %p136 = por %p134, %p135
    %p137 = scmp.ne.s32.totalorder %s126, %s127
    %p138 = scmp.eq.s32.totalorder %s16, 0
    %p139 = por %p137, %p138
    %p140 = scmp.ne.s32.totalorder %s126, %s127
    %p141 = scmp.eq.s32.totalorder %s17, 1
    %p142 = por %p140, %p141
    %p144 = scmp.ne.s32.totalorder %s127, %s143
    %p145 = scmp.eq.s32.totalorder %s17, 0
    %p146 = por %p144, %p145
    %s147 = ssub.s32 %s18, %s37
    %s148 = ssub.s32 %s19, %s33
    %s149 = sor.u32 %s147, %s148
    %p150 = scmp.eq.s32.totalorder %s149, 0
    %s152 = sadd.s32 %s151, 1
    %s153 = scalar_select %p150, %s151, %s152
    %p156 = pneg %p150
    %p157 = scmp.eq.s32.totalorder %s11, 1
    %p158 = por %p156, %p157
    %p159 = scmp.ne.s32.totalorder %s151, %s154
    %p160 = scmp.eq.s32.totalorder %s11, 0
    %p161 = por %p159, %p160
    %p162 = scmp.ne.s32.totalorder %s151, %s154
    %p163 = scmp.eq.s32.totalorder %s16, 1
    %p164 = por %p162, %p163
    %p165 = scmp.ne.s32.totalorder %s154, %s155
    %p166 = scmp.eq.s32.totalorder %s16, 0
    %p167 = por %p165, %p166
    %p168 = scmp.ne.s32.totalorder %s154, %s155
    %p169 = scmp.eq.s32.totalorder %s17, 1
    %p170 = por %p168, %p169
    %p172 = scmp.ne.s32.totalorder %s155, %s171
    %p173 = scmp.eq.s32.totalorder %s17, 0
    %p174 = por %p172, %p173
    %p175 = scmp.le.s32.totalorder 1, %s11
    %p176 = scmp.lt.s32.totalorder %s11, 3
    %p177 = pnand %p175, %p176
    %p178 = pneg %p177
    // Predicated region
    $region9: #{cross_entropy_forward.1} parent=5 // pred_check
      _
    $region10: #{cross_entropy_forward.1} parent=5 // pred_check_branch
      %180 = sbr.rel (%p177) target = $region12
    $region11: #{cross_entropy_forward.1} parent=5 // pred_region
      %s181 = ssub.s32 %s11, 1
      // Predicated region
      $region13: #{cross_entropy_forward.1} parent=11 // pred_check
        %p182 = pneg %p111
      $region14: #{cross_entropy_forward.1} parent=11 // pred_check_branch
        %184 = sbr.rel (%p182) target = $region16
      $region15: #{cross_entropy_forward.1} parent=11 // pred_region
        _
      $region16: #{cross_entropy_forward.1} parent=11 // pred_fallthru
        _
    $region12: #{cross_entropy_forward.1} parent=5 // pred_fallthru
      _
    %p185 = scmp.lt.s32.totalorder %s11, 2
    // Predicated region
    $region17: #{cross_entropy_forward.1} parent=5 // pred_check
      %p186 = pneg %p185
    $region18: #{cross_entropy_forward.1} parent=5 // pred_check_branch
      %188 = sbr.rel (%p186) target = $region20
    $region19: #{cross_entropy_forward.1} parent=5 // pred_region
      // Predicated region
      $region21: #{cross_entropy_forward.1} parent=19 // pred_check
        %p189 = pneg %p54
      $region22: #{cross_entropy_forward.1} parent=19 // pred_check_branch
        %191 = sbr.rel (%p189) target = $region24
      $region23: #{cross_entropy_forward.1} parent=19 // pred_region
        %s192 = sadd.s32 %s19, %s20
        %s193 = smul.u32 2, %s192
        %p194 = scmp.lt.s32.totalorder %s18, 1
        %s195 = scalar_select %p194, %s18, 1
        %p196 = scmp.lt.s32.totalorder %s193, 1
        %s197 = scalar_select %p196, %s193, 1
        %s198 = smul.addr %s195, 2
        %s199 = sadd.s32 %s197, %s198
        %s200 = smul.addr %s199, 4
        %s201 = scalar_lea.vmem %s0, %s200
        %s202 = sadd.s32 %s19, %s20
        %s203 = smul.u32 2, %s202
      $region24: #{cross_entropy_forward.1} parent=19 // pred_fallthru
        _
      // Predicated region
      $region25: #{cross_entropy_forward.1} parent=19 // pred_check
        %p204 = pneg %p84
      $region26: #{cross_entropy_forward.1} parent=19 // pred_check_branch
        %206 = sbr.rel (%p204) target = $region28
      $region27: #{cross_entropy_forward.1} parent=19 // pred_region
        %s207 = sadd.s32 %s19, %s20
        %s208 = smul.u32 2, %s207
        %p209 = scmp.lt.s32.totalorder %s18, 1
        %s210 = scalar_select %p209, %s18, 1
        %p211 = scmp.lt.s32.totalorder %s208, 1
        %s212 = scalar_select %p211, %s208, 1
        %s213 = smul.addr %s210, 2
        %s214 = sadd.s32 %s212, %s213
        %s215 = scalar_lea.vmem %s1, %s214
        %s216 = sadd.s32 %s19, %s20
        %s217 = smul.u32 2, %s216
      $region28: #{cross_entropy_forward.1} parent=19 // pred_fallthru
        _
    $region20: #{cross_entropy_forward.1} parent=5 // pred_fallthru
      _
    %p218 = scmp.le.s32.totalorder 1, %s11
    %p219 = scmp.lt.s32.totalorder %s11, 3
    %p220 = pnand %p218, %p219
    %p221 = pneg %p220
    // Predicated region
    $region29: #{cross_entropy_forward.1} parent=5 // pred_check
      _
    $region30: #{cross_entropy_forward.1} parent=5 // pred_check_branch
      %223 = sbr.rel (%p220) target = $region32
    $region31: #{cross_entropy_forward.1} parent=5 // pred_region
      %s224 = ssub.s32 %s11, 1
      %s225 = sadd.s32 %s22, %s23
      %s226 = smul.u32 2, %s225
      %p227 = scmp.lt.s32.totalorder %s21, 1
      %s228 = scalar_select %p227, %s21, 1
      %p229 = scmp.lt.s32.totalorder %s226, 1
      %s230 = scalar_select %p229, %s226, 1
      %s231 = smul.addr %s228, 2
      %s232 = sadd.s32 %s230, %s231
      %s233 = smul.addr %s232, 4
      %s234 = scalar_lea.vmem %s0, %s233
      %p235 = pneg %p60
      %p236 = pneg %p57
      %s237 = sadd.s32 %s22, %s23
      %s238 = smul.u32 2, %s237
      %p239 = scmp.lt.s32.totalorder %s21, 1
      %s240 = scalar_select %p239, %s21, 1
      %p241 = scmp.lt.s32.totalorder %s238, 1
      %s242 = scalar_select %p241, %s238, 1
      %s243 = smul.addr %s240, 2
      %s244 = sadd.s32 %s242, %s243
      %s245 = scalar_lea.vmem %s1, %s244
      %p246 = pneg %p90
      %p247 = pneg %p87
      %p248 = pneg %p111
      %p249 = pneg %p108
      %p250 = pneg %p139
      %p251 = pneg %p136
      %p252 = scmp.lt.s32.totalorder %s21, 1
      %s253 = scalar_select %p252, %s21, 1
      %p254 = scmp.lt.s32.totalorder %s22, 0
      %s255 = scalar_select %p254, %s22, 0
      %s256 = sadd.s32 %s255, %s253
      %s257 = scalar_lea.vmem %s3, %s256
      %p258 = pneg %p167
      %p259 = pneg %p164
      %p260 = scmp.lt.s32.totalorder %s21, 1
      %s261 = scalar_select %p260, %s21, 1
      %p262 = scmp.lt.s32.totalorder %s22, 0
      %s263 = scalar_select %p262, %s22, 0
      %s264 = sadd.s32 %s263, %s261
      %s265 = scalar_lea.vmem %s4, %s264
      %s266 = sadd.s32 %s22, %s23
      %s267 = smul.u32 2, %s266
      %p268 = scmp.lt.s32.totalorder %s21, 1
      %s269 = scalar_select %p268, %s21, 1
      %p270 = scmp.lt.s32.totalorder %s267, 1
      %s271 = scalar_select %p270, %s267, 1
      %s272 = smul.addr %s269, 2
      %s273 = sadd.s32 %s271, %s272
      %s274 = smul.addr %s273, 4
      %s275 = scalar_lea.vmem %s0, %s274
      %s276 = sadd.s32 %s22, %s23
      %s277 = smul.u32 2, %s276
      %s278 = sadd.s32 %s22, %s23
      %s279 = smul.u32 2, %s278
      %p280 = scmp.lt.s32.totalorder %s21, 1
      %s281 = scalar_select %p280, %s21, 1
      %p282 = scmp.lt.s32.totalorder %s279, 1
      %s283 = scalar_select %p282, %s279, 1
      %s284 = smul.addr %s281, 2
      %s285 = sadd.s32 %s283, %s284
      %s286 = scalar_lea.vmem %s1, %s285
      %s287 = sadd.s32 %s22, %s23
      %s288 = smul.u32 2, %s287
      %p289 = scmp.lt.s32.totalorder %s21, 1
      %s290 = scalar_select %p289, %s21, 1
      %p291 = scmp.lt.s32.totalorder %s22, 0
      %s292 = scalar_select %p291, %s22, 0
      %s293 = sadd.s32 %s292, %s290
      %s294 = scalar_lea.vmem %s3, %s293
      %p295 = scmp.lt.s32.totalorder %s21, 1
      %s296 = scalar_select %p295, %s21, 1
      %p297 = scmp.lt.s32.totalorder %s22, 0
      %s298 = scalar_select %p297, %s22, 0
      %s299 = sadd.s32 %s298, %s296
      %s300 = scalar_lea.vmem %s4, %s299
      %p301 = scmp.eq.s32.totalorder %s23, 0
      // Predicated region
      $region33: #{cross_entropy_forward.1} parent=31 // pred_check
        %p302 = pneg %p301
      $region34: #{cross_entropy_forward.1} parent=31 // pred_check_branch
        %304 = sbr.rel (%p302) target = $region36
      $region35: #{cross_entropy_forward.1} parent=31 // pred_region
        %v305 = vlaneseq
        %vm306 = vcmp.ge.s32.totalorder %v305, 0
        %vm307 = vcmp.lt.s32.totalorder %v305, 256
        %vm308 = vmand %vm306, %vm307
        %309 = vst.msk [vmem:[#allocation2] sm:$0x3] %vm308, 0.0
        %310 = vst.msk [vmem:[#allocation3] sm:$0x3] %vm308, 0.0
      $region36: #{cross_entropy_forward.1} parent=31 // pred_fallthru
        _
      %v311 = vld [vmem:[%s275] sm:$0xff]
      %v312 = vld [vmem:[%s286] sm:$0x3]
      %s313 = sadd.s32 %s22, %s23
      %s314 = smul.u32 %s313, 256
      %v315 = vlaneseq
      %v316 = vand.u32 %v315, 127
      %v317 = vadd.s32 %v316, 128
      %v318 = vstv %s314
      %v319 = vadd.s32 %v318, %v316
      %v320 = vadd.s32 %v318, %v317
      %vm321 = vcmp.lt.s32.totalorder %v319, 256
      %vm322 = vcmp.lt.s32.totalorder %v320, 256
      %v323 = vlaneseq
      %v324 = vshrl.u32 %v323, 7
      %v325 = vperm.slane %v312, 0
      %v326 = vperm.slane %v312, 1
      %vm327 = vcmp.eq.s32.totalorder %v324, %v325
      %vm328 = vcmp.eq.s32.totalorder %v324, %v326
      %v329 = vsel %vm321, 1, 0
      %v330 = vsel %vm322, 1, 0
      %vm331 = vcmp.eq.s32.totalorder %v329, 1
      %vm332 = vcmp.eq.s32.totalorder %v330, 1
      %vm333 = vmand %vm327, %vm331
      %vm334 = vmand %vm328, %vm332
      %vm335 = vcmp.ge.s32.totalorder %v312, 0
      %v336 = vsel %vm335, 1, 0
      %v337 = vperm.slane %v336, 0
      %v338 = vperm.slane %v336, 1
      %vm339 = vcmp.ne.s32.totalorder %v337, 0
      %vm340 = vcmp.ne.s32.totalorder %v338, 0
      %vm341 = vmand %vm321, %vm339
      %vm342 = vmand %vm322, %vm340
      %vm343 = vcmp.lt.s32.totalorder %v312, 4
      %v344 = vsel %vm343, 1, 0
      %v345 = vperm.slane %v344, 0
      %v346 = vperm.slane %v344, 1
      %vm347 = vcmp.ne.s32.totalorder %v345, 0
      %vm348 = vcmp.ne.s32.totalorder %v346, 0
      %vm349 = vmand %vm341, %vm347
      %vm350 = vmand %vm342, %vm348
      %352 = vst [vmem:[#allocation1] ss:$2 sm:$0xff] %v311
      %v353 = vld.sshfl [vmem:[#allocation1] sm:$0xff pattern:$0x75316420]
      %v354 = vld.sshfl [vmem:[#allocation1 + $0x8] sm:$0xff pattern:$0x75316420]
      %vm357 = vcmask 1043456
      %v358 = vsel %vm357, %v353, -inf
      %v359 = vrot.slane %v358, 4
      %v360 = vmax.f32 %v358, %v359
      %v361 = vrot.slane %v360, 2
      %v362 = vmax.f32 %v360, %v361
      %v363 = vrot.slane %v362, 1
      %v364 = vmax.f32 %v362, %v363
      %v365 = vsel %vm357, %v354, -inf
      %v366 = vrot.slane %v365, 4
      %v367 = vmax.f32 %v365, %v366
      %v368 = vrot.slane %v367, 2
      %v369 = vmax.f32 %v367, %v368
      %v370 = vrot.slane %v369, 1
      %v371 = vmax.f32 %v369, %v370
      %v374 = vrot.slane %v371, 4
      %v375 = vsel %vm357, %v364, %v374
      %v377 = vsub.f32 %v311, %v375
      %v378 = vmul.f32 %v377, 1.442695
      %v379 = vpow.pop %v378
      %381 = vst [vmem:[#allocation1] ss:$2 sm:$0xff] %v379
      %v382 = vld.sshfl [vmem:[#allocation1] sm:$0xff pattern:$0x75316420]
      %v383 = vld.sshfl [vmem:[#allocation1 + $0x8] sm:$0xff pattern:$0x75316420]
      %v386 = vsel %vm357, %v382, 0.0
      %v387 = vrot.slane %v386, 4
      %v388 = vadd.f32 %v386, %v387
      %v389 = vrot.slane %v388, 2
      %v390 = vadd.f32 %v388, %v389
      %v391 = vrot.slane %v390, 1
      %v392 = vadd.f32 %v390, %v391
      %v393 = vsel %vm357, %v383, 0.0
      %v394 = vrot.slane %v393, 4
      %v395 = vadd.f32 %v393, %v394
      %v396 = vrot.slane %v395, 2
      %v397 = vadd.f32 %v395, %v396
      %v398 = vrot.slane %v397, 1
      %v399 = vadd.f32 %v397, %v398
      %v400 = vlog2.pop %v392
      %v401 = vmul.f32 %v400, 0.6931472
      %v402 = vlog2.pop %v399
      %v403 = vmul.f32 %v402, 0.6931472
      %v404 = vadd.f32 %v364, %v401
      %v405 = vadd.f32 %v371, %v403
      %406 = vst [vmem:[#allocation1] ss:$2 sm:$0xff] %v311
      %v407 = vld.sshfl [vmem:[#allocation1] sm:$0xff pattern:$0x75316420]
      %v408 = vld.sshfl [vmem:[#allocation1 + $0x8] sm:$0xff pattern:$0x75316420]
      %v411 = vsel %vm333, %v407, 0.0
      %v412 = vsel %vm334, %v408, 0.0
      %v413 = vsel %vm357, %v411, 0.0
      %v414 = vrot.slane %v413, 4
      %v415 = vadd.f32 %v413, %v414
      %v416 = vrot.slane %v415, 2
      %v417 = vadd.f32 %v415, %v416
      %v418 = vrot.slane %v417, 1
      %v419 = vadd.f32 %v417, %v418
      %v420 = vsel %vm357, %v412, 0.0
      %v421 = vrot.slane %v420, 4
      %v422 = vadd.f32 %v420, %v421
      %v423 = vrot.slane %v422, 2
      %v424 = vadd.f32 %v422, %v423
      %v425 = vrot.slane %v424, 1
      %v426 = vadd.f32 %v424, %v425
      %v427 = vsel %vm349, 1, 0
      %v428 = vsel %vm350, 1, 0
      %v429 = vcvt.s32.f32 %v427
      %v430 = vcvt.s32.f32 %v428
      %v431 = vsub.f32 %v404, %v419
      %v432 = vsub.f32 %v405, %v426
      %v433 = vmul.f32 %v429, %v431
      %v434 = vmul.f32 %v430, %v432
      %v435 = vsel %vm349, %v433, 0.0
      %v436 = vsel %vm350, %v434, 0.0
      %v437 = vld [vmem:[#allocation2] sm:$0x3]
      %v440 = vrot.slane %v436, 7
      %vm441 = vcmask 1040384
      %v442 = vsel %vm441, %v435, %v440
      %v444 = vadd.f32 %v437, %v442
      %v445 = vlaneseq
      %vm446 = vcmp.ge.s32.totalorder %v445, 0
      %vm447 = vcmp.lt.s32.totalorder %v445, 256
      %vm448 = vmand %vm446, %vm447
      %449 = vst.msk [vmem:[#allocation2] sm:$0x3] %vm448, %v444
      %v450 = vld [vmem:[#allocation3] sm:$0x3]
      %v453 = vrot.slane %v430, 7
      %v454 = vsel %vm441, %v429, %v453
      %v456 = vadd.f32 %v450, %v454
      %457 = vst.msk [vmem:[#allocation3] sm:$0x3] %vm448, %v456
      // Predicated region
      $region37: #{cross_entropy_forward.1} parent=31 // pred_check
        %p458 = pneg %p301
      $region38: #{cross_entropy_forward.1} parent=31 // pred_check_branch
        %460 = sbr.rel (%p458) target = $region40
      $region39: #{cross_entropy_forward.1} parent=31 // pred_region
        %v461 = vld [vmem:[#allocation2] sm:$0x3]
        %v463 = vperm.slane %v461, 0
        %v464 = vperm.slane %v461, 1
        %v467 = vsel %vm441, %v463, 0.0
        %v468 = vsel %vm441, %v464, 0.0
        %v469 = vadd.f32 %v467, %v468
        %470 = vadd.xlane.f32.xlu0 %v469
        %v471 = vpop.xlane.xlu0 %470
        %vm472 = vcmask 0
        %473 = vst.msk [vmem:[%s294] sm:$0x1] %vm472, %v471
        %v474 = vld [vmem:[#allocation3] sm:$0x3]
        %v476 = vperm.slane %v474, 0
        %v477 = vperm.slane %v474, 1
        %v480 = vsel %vm441, %v476, 0.0
        %v481 = vsel %vm441, %v477, 0.0
        %v482 = vadd.f32 %v480, %v481
        %483 = vadd.xlane.f32.xlu0 %v482
        %v484 = vpop.xlane.xlu0 %483
        %485 = vst.msk [vmem:[%s300] sm:$0x1] %vm472, %v484
      $region40: #{cross_entropy_forward.1} parent=31 // pred_fallthru
        _
      %p486 = scmp.lt.s32.totalorder %s21, 1
      %s487 = scalar_select %p486, %s21, 1
      %p488 = scmp.lt.s32.totalorder %s22, 0
      %s489 = scalar_select %p488, %s22, 0
      %s490 = sadd.s32 %s489, %s487
      %s491 = scalar_lea.vmem %s3, %s490
      %p492 = scmp.lt.s32.totalorder %s21, 1
      %s493 = scalar_select %p492, %s21, 1
      %p494 = scmp.lt.s32.totalorder %s22, 0
      %s495 = scalar_select %p494, %s22, 0
      %s496 = sadd.s32 %s495, %s493
      %s497 = scalar_lea.vmem %s4, %s496
      // Predicated region
      $region41: #{cross_entropy_forward.1} parent=31 // pred_check
        %p498 = pneg %p136
      $region42: #{cross_entropy_forward.1} parent=31 // pred_check_branch
        %500 = sbr.rel (%p498) target = $region44
      $region43: #{cross_entropy_forward.1} parent=31 // pred_region
        _
      $region44: #{cross_entropy_forward.1} parent=31 // pred_fallthru
        _
      // Predicated region
      $region45: #{cross_entropy_forward.1} parent=31 // pred_check
        %p501 = pneg %p164
      $region46: #{cross_entropy_forward.1} parent=31 // pred_check_branch
        %503 = sbr.rel (%p501) target = $region48
      $region47: #{cross_entropy_forward.1} parent=31 // pred_region
        _
      $region48: #{cross_entropy_forward.1} parent=31 // pred_fallthru
        _
    $region32: #{cross_entropy_forward.1} parent=5 // pred_fallthru
      _
    %p504 = scmp.le.s32.totalorder 2, %s11
    // Predicated region
    $region49: #{cross_entropy_forward.1} parent=5 // pred_check
      %p505 = pneg %p504
    $region50: #{cross_entropy_forward.1} parent=5 // pred_check_branch
      %507 = sbr.rel (%p505) target = $region52
    $region51: #{cross_entropy_forward.1} parent=5 // pred_region
      %s508 = ssub.s32 %s11, 2
      // Predicated region
      $region53: #{cross_entropy_forward.1} parent=51 // pred_check
        %p509 = pneg %p142
      $region54: #{cross_entropy_forward.1} parent=51 // pred_check_branch
        %511 = sbr.rel (%p509) target = $region56
      $region55: #{cross_entropy_forward.1} parent=51 // pred_region
        %p512 = scmp.lt.s32.totalorder %s24, 1
        %s513 = scalar_select %p512, %s24, 1
        %p514 = scmp.lt.s32.totalorder %s25, 0
        %s515 = scalar_select %p514, %s25, 0
        %s516 = sadd.s32 %s515, %s513
        %s517 = scalar_lea.vmem %s3, %s516
      $region56: #{cross_entropy_forward.1} parent=51 // pred_fallthru
        _
      // Predicated region
      $region57: #{cross_entropy_forward.1} parent=51 // pred_check
        %p518 = pneg %p170
      $region58: #{cross_entropy_forward.1} parent=51 // pred_check_branch
        %520 = sbr.rel (%p518) target = $region60
      $region59: #{cross_entropy_forward.1} parent=51 // pred_region
        %p521 = scmp.lt.s32.totalorder %s24, 1
        %s522 = scalar_select %p521, %s24, 1
        %p523 = scmp.lt.s32.totalorder %s25, 0
        %s524 = scalar_select %p523, %s25, 0
        %s525 = sadd.s32 %s524, %s522
        %s526 = scalar_lea.vmem %s4, %s525
      $region60: #{cross_entropy_forward.1} parent=51 // pred_fallthru
        _
    $region52: #{cross_entropy_forward.1} parent=5 // pred_fallthru
      _
  $region6: #{cross_entropy_forward.1} parent=0 // loop_footer
    %s15 = sadd.s32 1, %s11
  $region7: #{cross_entropy_forward.1} parent=0 // loop_footer_branch
    %10 = sbr.rel target = $region3
  $region8: #{cross_entropy_forward.1} parent=0 // loop_exit
    _

</llo_original>
